<compile_context>
chip_gen: v7x
topology: tpu7x:2x2x1
jax: 0.10.0
libtpu: 0.0.40
codegen_flags: <defaults>
</compile_context>

<pallas_src>
import functools
import math

import jax
import jax.numpy as jnp
import numpy as np
from jax.experimental import pallas as pl
from jax.experimental.pallas import tpu as pltpu


def _round_up(x, m):
    return ((x + m - 1) // m) * m


def _rel_pos_bias_kernel(w_ref, out_ref, *, num_buckets, max_distance,
                         bidirectional, n_heads, tile_q, tile_k, strip_len):
    """w_ref:   SMEM (num_buckets * n_heads,) f32 table, bucket-major (w[b, h]).
    out_ref: VMEM (n_heads, tile_q, tile_k) bias tile."""
    q0 = pl.program_id(0) * tile_q          # global query offset of this tile
    k0 = pl.program_id(1) * tile_k          # global key offset of this tile

    # Strip of relative positions.  SS[r, j] corresponds to
    #   rel = base + j - r,  base = (k0 - q0) - (tile_q - 1)
    # so that out[h, 8g + r, kl] = SS_h[r, kl + (tile_q - 1 - 8g)].
    base = k0 - q0 - (tile_q - 1)
    j = jax.lax.broadcasted_iota(jnp.int32, (8, strip_len), 1)
    r = jax.lax.broadcasted_iota(jnp.int32, (8, strip_len), 0)
    relative_position = base + j - r        # memory_position - context_position

    # --- _relative_position_bucket (elementwise math, strip-sized only) ---
    n = -relative_position
    nb = num_buckets
    if bidirectional:
        nb //= 2
        offs = jnp.where(n < 0, nb, 0)      # ret += (n < 0) * num_buckets
        n = jnp.abs(n)
    else:
        offs = None
        n = jnp.maximum(n, 0)

    max_exact = nb // 2
    is_small = n < max_exact
    # clamp to >=1 before the log to avoid -inf; those lanes are masked by is_small
    n_f = jnp.maximum(n.astype(jnp.float32), 1.0)
    val_if_large = max_exact + (
        jnp.log(n_f / max_exact)
        / math.log(max_distance / max_exact)
        * (nb - max_exact)
    ).astype(jnp.int32)                     # truncation toward zero == .to(torch.long)
    val_if_large = jnp.minimum(val_if_large, nb - 1)

    bucket = jnp.where(is_small, n, val_if_large)
    if bidirectional:
        bucket = bucket + offs              # int32 in [0, num_buckets)

    # --- embedding lookup on the strip: nn.Embedding(num_buckets, n_heads) ---
    # One compare per bucket (shared across heads) + one select per
    # (bucket, head); all table scalars are hoisted SMEM reads.  This runs on
    # the (8, strip_len) strip, not the (tile_q, tile_k) tile, so it's cheap.
    w = [[w_ref[b * n_heads + h] for h in range(n_heads)]
         for b in range(num_buckets)]
    strips = [jnp.zeros((8, strip_len), jnp.float32) for _ in range(n_heads)]
    for b in range(num_buckets):
        mask = bucket == b
        for h in range(n_heads):
            strips[h] = jnp.where(mask, w[b][h], strips[h])

    # --- Toeplitz expansion: one static lane-offset slice + one full-vreg
    #     (8, tile_k) store per 8-row group per head. ---
    for h in range(n_heads):
        sh = strips[h].astype(out_ref.dtype)
        for g in range(tile_q // 8):
            s = tile_q - 1 - 8 * g          # static per row group
            out_ref[h, 8 * g:8 * (g + 1), :] = sh[:, s:s + tile_k]


def relative_position_bias(weight, qlen, klen, *, bidirectional=True,
                           num_buckets=32, max_distance=32,
                           out_dtype=jnp.float32, tile_q=None, tile_k=None):
    """T5 relative position bias.  Returns (1, n_heads, qlen, klen).

    `max_distance` defaults to 32 to reproduce the reference module exactly
    (its compute_bias() does not forward self.max_distance, so the staticmethod
    default 32 is used regardless of the __init__ argument)."""
    assert weight.ndim == 2 and weight.shape[0] == num_buckets
    n_heads = weight.shape[1]

    # Lane-dense key tile (multiple of 128), sublane-aligned query tile
    # (multiple of 8, so rows are written in aligned groups of 8 sublanes);
    # the padded output is sliced back afterwards.
    if tile_k is None:
        tile_k = min(1024, _round_up(klen, 128))
    if tile_q is None:
        tile_q = min(256, _round_up(qlen, 8))
    assert tile_k % 128 == 0 and tile_q % 8 == 0

    # Keep one output block <= 4 MiB so double buffering + temporaries stay
    # comfortably inside the scoped VMEM limit on v5e/v6e/v7x.
    itemsize = jnp.dtype(out_dtype).itemsize
    while n_heads * tile_q * tile_k * itemsize > 4 * 1024 * 1024:
        if tile_q > 8:
            tile_q = max(8, _round_up(tile_q // 2, 8))
        elif tile_k > 128:
            tile_k = max(128, _round_up(tile_k // 2, 128))
        else:
            break

    q_pad = _round_up(qlen, tile_q)
    k_pad = _round_up(klen, tile_k)
    grid = (q_pad // tile_q, k_pad // tile_k)
    strip_len = _round_up(tile_q + tile_k - 1, 128)

    kernel = functools.partial(
        _rel_pos_bias_kernel,
        num_buckets=num_buckets, max_distance=max_distance,
        bidirectional=bidirectional, n_heads=n_heads,
        tile_q=tile_q, tile_k=tile_k, strip_len=strip_len)

    out = pl.pallas_call(
        kernel,
        out_shape=jax.ShapeDtypeStruct((n_heads, q_pad, k_pad), out_dtype),
        grid=grid,
        in_specs=[pl.BlockSpec(memory_space=pltpu.MemorySpace.SMEM)],
        out_specs=pl.BlockSpec((n_heads, tile_q, tile_k),
                               lambda qi, ki: (0, qi, ki)),
        compiler_params=pltpu.CompilerParams(
            dimension_semantics=("parallel", "parallel"),
            vmem_limit_bytes=32 * 1024 * 1024),
    )(weight.reshape(num_buckets * n_heads).astype(jnp.float32))

    return out[:, :qlen, :klen][None]        # (1, n_heads, qlen, klen)


def _reference_numpy(weight, qlen, klen, *, bidirectional=True, num_buckets=32,
                     max_distance=32):
    cp = np.arange(qlen, dtype=np.int64)[:, None]
    mp = np.arange(klen, dtype=np.int64)[None, :]
    rel = mp - cp
    n = -rel
    nb = num_buckets
    ret = np.zeros_like(n)
    if bidirectional:
        nb //= 2
        ret = ret + (n < 0).astype(np.int64) * nb
        n = np.abs(n)
    else:
        n = np.maximum(n, 0)
    max_exact = nb // 2
    is_small = n < max_exact
    n_f = np.maximum(n.astype(np.float32), 1.0)
    val = max_exact + (
        np.log(n_f / max_exact) / math.log(max_distance / max_exact)
        * (nb - max_exact)
    ).astype(np.int64)
    val = np.minimum(val, nb - 1)
    bucket = ret + np.where(is_small, n, val)
    vals = np.asarray(weight)[bucket]            # (qlen, klen, n_heads)
    return np.transpose(vals, (2, 0, 1))[None]   # (1, n_heads, qlen, klen)


if __name__ == "__main__":
    num_buckets = 32
    key = jax.random.PRNGKey(0)
    k2, k4 = jax.random.split(key)
    weight2 = jax.random.normal(k2, (num_buckets, 2), dtype=jnp.float32)  # module default n_heads=2
    weight4 = jax.random.normal(k4, (num_buckets, 4), dtype=jnp.float32)  # extra head-count coverage

    # (weight, bidirectional, qlen, klen, tile_q, tile_k)
    cases = [
        (weight2, True, 16, 16, None, None),    # module-default small shape, single tile
        (weight2, True, 20, 40, 8, 128),        # q/k padding + multi-row-group expansion
        (weight2, False, 24, 200, 8, 128),      # multi-tile grid in both dims, causal
        (weight2, True, 64, 256, 16, 128),      # multi-tile grid, bidirectional
        (weight4, True, 16, 16, None, None),    # larger head count
    ]
    for weight, bidirectional, qlen, klen, tq, tk in cases:
        out = relative_position_bias(
            weight, qlen, klen, bidirectional=bidirectional,
            num_buckets=num_buckets, tile_q=tq, tile_k=tk)
        out = jax.block_until_ready(out)
        ref = _reference_numpy(np.asarray(weight), qlen, klen,
                               bidirectional=bidirectional,
                               num_buckets=num_buckets, max_distance=32)
        n_heads = weight.shape[1]
        assert out.shape == (1, n_heads, qlen, klen), out.shape
        np.testing.assert_allclose(np.asarray(out), ref, rtol=1e-6, atol=1e-6)

    print("KERNEL_OK")
</pallas_src>

<mosaic_0001>
module attributes {stable_mosaic.version = 11 : i64} {
  func.func @_rel_pos_bias_kernel(%arg0: i32, %arg1: i32, %arg2: memref<64xf32, #tpu.memory_space<smem>>, %arg3: memref<2x16x128xf32, #tpu.memory_space<vmem>>) attributes {dimension_semantics = [#tpu.dimension_semantics<parallel>, #tpu.dimension_semantics<parallel>], iteration_bounds = array<i64: 1, 1>, scalar_prefetch = 0 : i64, scratch_operands = 0 : i64, tpu.core_type = #tpu.core_type<tc>, window_params = [{transform_indices = @transform_0, window_bounds = array<i64: 64>}, {transform_indices = @transform_1, window_bounds = array<i64: 2, 16, 128>}]} {
    %c16_i32 = arith.constant 16 : i32
    %0 = arith.muli %arg0, %c16_i32 : i32
    %c128_i32 = arith.constant 128 : i32
    %1 = arith.muli %arg1, %c128_i32 : i32
    %2 = arith.subi %1, %0 : i32
    %c15_i32 = arith.constant 15 : i32
    %3 = arith.subi %2, %c15_i32 : i32
    %4 = tpu.iota {dimensions = array<i32: 1>} : vector<8x256xi32>
    %5 = tpu.iota {dimensions = array<i32: 0>} : vector<8x256xi32>
    %6 = vector.broadcast %3 : i32 to vector<8x256xi32>
    %7 = arith.addi %6, %4 : vector<8x256xi32>
    %8 = arith.subi %7, %5 : vector<8x256xi32>
    %c0_i32 = arith.constant 0 : i32
    %9 = vector.broadcast %c0_i32 : i32 to vector<8x256xi32>
    %10 = arith.subi %9, %8 : vector<8x256xi32>
    %c0_i32_0 = arith.constant 0 : i32
    %11 = vector.broadcast %c0_i32_0 : i32 to vector<8x256xi32>
    %12 = arith.cmpi slt, %10, %11 : vector<8x256xi32>
    %c16_i32_1 = arith.constant 16 : i32
    %c0_i32_2 = arith.constant 0 : i32
    %13 = vector.broadcast %c16_i32_1 : i32 to vector<8x256xi32>
    %14 = vector.broadcast %c0_i32_2 : i32 to vector<8x256xi32>
    %15 = arith.select %12, %13, %14 : vector<8x256xi1>, vector<8x256xi32>
    %16 = math.absi %10 : vector<8x256xi32>
    %c8_i32 = arith.constant 8 : i32
    %17 = vector.broadcast %c8_i32 : i32 to vector<8x256xi32>
    %18 = arith.cmpi slt, %16, %17 : vector<8x256xi32>
    %19 = arith.sitofp %16 : vector<8x256xi32> to vector<8x256xf32>
    %cst = arith.constant 1.000000e+00 : f32
    %20 = vector.broadcast %cst : f32 to vector<8x256xf32>
    %21 = arith.maximumf %19, %20 : vector<8x256xf32>
    %cst_3 = arith.constant 8.000000e+00 : f32
    %22 = vector.broadcast %cst_3 : f32 to vector<8x256xf32>
    %23 = arith.divf %21, %22 : vector<8x256xf32>
    %24 = math.log %23 : vector<8x256xf32>
    %cst_4 = arith.constant 1.38629436 : f32
    %25 = vector.broadcast %cst_4 : f32 to vector<8x256xf32>
    %26 = arith.divf %24, %25 : vector<8x256xf32>
    %cst_5 = arith.constant 8.000000e+00 : f32
    %27 = vector.broadcast %cst_5 : f32 to vector<8x256xf32>
    %28 = arith.mulf %26, %27 : vector<8x256xf32>
    %29 = arith.fptosi %28 : vector<8x256xf32> to vector<8x256xi32>
    %c8_i32_6 = arith.constant 8 : i32
    %30 = vector.broadcast %c8_i32_6 : i32 to vector<8x256xi32>
    %31 = arith.addi %30, %29 : vector<8x256xi32>
    %c15_i32_7 = arith.constant 15 : i32
    %32 = vector.broadcast %c15_i32_7 : i32 to vector<8x256xi32>
    %33 = arith.minsi %31, %32 : vector<8x256xi32>
    %34 = arith.select %18, %16, %33 : vector<8x256xi1>, vector<8x256xi32>
    %35 = arith.addi %34, %15 : vector<8x256xi32>
    %c0 = arith.constant 0 : index
    %36 = memref.load %arg2[%c0] : memref<64xf32, #tpu.memory_space<smem>>
    %c1 = arith.constant 1 : index
    %37 = memref.load %arg2[%c1] : memref<64xf32, #tpu.memory_space<smem>>
    %c2 = arith.constant 2 : index
    %38 = memref.load %arg2[%c2] : memref<64xf32, #tpu.memory_space<smem>>
    %c3 = arith.constant 3 : index
    %39 = memref.load %arg2[%c3] : memref<64xf32, #tpu.memory_space<smem>>
    %c4 = arith.constant 4 : index
    %40 = memref.load %arg2[%c4] : memref<64xf32, #tpu.memory_space<smem>>
    %c5 = arith.constant 5 : index
    %41 = memref.load %arg2[%c5] : memref<64xf32, #tpu.memory_space<smem>>
    %c6 = arith.constant 6 : index
    %42 = memref.load %arg2[%c6] : memref<64xf32, #tpu.memory_space<smem>>
    %c7 = arith.constant 7 : index
    %43 = memref.load %arg2[%c7] : memref<64xf32, #tpu.memory_space<smem>>
    %c8 = arith.constant 8 : index
    %44 = memref.load %arg2[%c8] : memref<64xf32, #tpu.memory_space<smem>>
    %c9 = arith.constant 9 : index
    %45 = memref.load %arg2[%c9] : memref<64xf32, #tpu.memory_space<smem>>
    %c10 = arith.constant 10 : index
    %46 = memref.load %arg2[%c10] : memref<64xf32, #tpu.memory_space<smem>>
    %c11 = arith.constant 11 : index
    %47 = memref.load %arg2[%c11] : memref<64xf32, #tpu.memory_space<smem>>
    %c12 = arith.constant 12 : index
    %48 = memref.load %arg2[%c12] : memref<64xf32, #tpu.memory_space<smem>>
    %c13 = arith.constant 13 : index
    %49 = memref.load %arg2[%c13] : memref<64xf32, #tpu.memory_space<smem>>
    %c14 = arith.constant 14 : index
    %50 = memref.load %arg2[%c14] : memref<64xf32, #tpu.memory_space<smem>>
    %c15 = arith.constant 15 : index
    %51 = memref.load %arg2[%c15] : memref<64xf32, #tpu.memory_space<smem>>
    %c16 = arith.constant 16 : index
    %52 = memref.load %arg2[%c16] : memref<64xf32, #tpu.memory_space<smem>>
    %c17 = arith.constant 17 : index
    %53 = memref.load %arg2[%c17] : memref<64xf32, #tpu.memory_space<smem>>
    %c18 = arith.constant 18 : index
    %54 = memref.load %arg2[%c18] : memref<64xf32, #tpu.memory_space<smem>>
    %c19 = arith.constant 19 : index
    %55 = memref.load %arg2[%c19] : memref<64xf32, #tpu.memory_space<smem>>
    %c20 = arith.constant 20 : index
    %56 = memref.load %arg2[%c20] : memref<64xf32, #tpu.memory_space<smem>>
    %c21 = arith.constant 21 : index
    %57 = memref.load %arg2[%c21] : memref<64xf32, #tpu.memory_space<smem>>
    %c22 = arith.constant 22 : index
    %58 = memref.load %arg2[%c22] : memref<64xf32, #tpu.memory_space<smem>>
    %c23 = arith.constant 23 : index
    %59 = memref.load %arg2[%c23] : memref<64xf32, #tpu.memory_space<smem>>
    %c24 = arith.constant 24 : index
    %60 = memref.load %arg2[%c24] : memref<64xf32, #tpu.memory_space<smem>>
    %c25 = arith.constant 25 : index
    %61 = memref.load %arg2[%c25] : memref<64xf32, #tpu.memory_space<smem>>
    %c26 = arith.constant 26 : index
    %62 = memref.load %arg2[%c26] : memref<64xf32, #tpu.memory_space<smem>>
    %c27 = arith.constant 27 : index
    %63 = memref.load %arg2[%c27] : memref<64xf32, #tpu.memory_space<smem>>
    %c28 = arith.constant 28 : index
    %64 = memref.load %arg2[%c28] : memref<64xf32, #tpu.memory_space<smem>>
    %c29 = arith.constant 29 : index
    %65 = memref.load %arg2[%c29] : memref<64xf32, #tpu.memory_space<smem>>
    %c30 = arith.constant 30 : index
    %66 = memref.load %arg2[%c30] : memref<64xf32, #tpu.memory_space<smem>>
    %c31 = arith.constant 31 : index
    %67 = memref.load %arg2[%c31] : memref<64xf32, #tpu.memory_space<smem>>
    %c32 = arith.constant 32 : index
    %68 = memref.load %arg2[%c32] : memref<64xf32, #tpu.memory_space<smem>>
    %c33 = arith.constant 33 : index
    %69 = memref.load %arg2[%c33] : memref<64xf32, #tpu.memory_space<smem>>
    %c34 = arith.constant 34 : index
    %70 = memref.load %arg2[%c34] : memref<64xf32, #tpu.memory_space<smem>>
    %c35 = arith.constant 35 : index
    %71 = memref.load %arg2[%c35] : memref<64xf32, #tpu.memory_space<smem>>
    %c36 = arith.constant 36 : index
    %72 = memref.load %arg2[%c36] : memref<64xf32, #tpu.memory_space<smem>>
    %c37 = arith.constant 37 : index
    %73 = memref.load %arg2[%c37] : memref<64xf32, #tpu.memory_space<smem>>
    %c38 = arith.constant 38 : index
    %74 = memref.load %arg2[%c38] : memref<64xf32, #tpu.memory_space<smem>>
    %c39 = arith.constant 39 : index
    %75 = memref.load %arg2[%c39] : memref<64xf32, #tpu.memory_space<smem>>
    %c40 = arith.constant 40 : index
    %76 = memref.load %arg2[%c40] : memref<64xf32, #tpu.memory_space<smem>>
    %c41 = arith.constant 41 : index
    %77 = memref.load %arg2[%c41] : memref<64xf32, #tpu.memory_space<smem>>
    %c42 = arith.constant 42 : index
    %78 = memref.load %arg2[%c42] : memref<64xf32, #tpu.memory_space<smem>>
    %c43 = arith.constant 43 : index
    %79 = memref.load %arg2[%c43] : memref<64xf32, #tpu.memory_space<smem>>
    %c44 = arith.constant 44 : index
    %80 = memref.load %arg2[%c44] : memref<64xf32, #tpu.memory_space<smem>>
    %c45 = arith.constant 45 : index
    %81 = memref.load %arg2[%c45] : memref<64xf32, #tpu.memory_space<smem>>
    %c46 = arith.constant 46 : index
    %82 = memref.load %arg2[%c46] : memref<64xf32, #tpu.memory_space<smem>>
    %c47 = arith.constant 47 : index
    %83 = memref.load %arg2[%c47] : memref<64xf32, #tpu.memory_space<smem>>
    %c48 = arith.constant 48 : index
    %84 = memref.load %arg2[%c48] : memref<64xf32, #tpu.memory_space<smem>>
    %c49 = arith.constant 49 : index
    %85 = memref.load %arg2[%c49] : memref<64xf32, #tpu.memory_space<smem>>
    %c50 = arith.constant 50 : index
    %86 = memref.load %arg2[%c50] : memref<64xf32, #tpu.memory_space<smem>>
    %c51 = arith.constant 51 : index
    %87 = memref.load %arg2[%c51] : memref<64xf32, #tpu.memory_space<smem>>
    %c52 = arith.constant 52 : index
    %88 = memref.load %arg2[%c52] : memref<64xf32, #tpu.memory_space<smem>>
    %c53 = arith.constant 53 : index
    %89 = memref.load %arg2[%c53] : memref<64xf32, #tpu.memory_space<smem>>
    %c54 = arith.constant 54 : index
    %90 = memref.load %arg2[%c54] : memref<64xf32, #tpu.memory_space<smem>>
    %c55 = arith.constant 55 : index
    %91 = memref.load %arg2[%c55] : memref<64xf32, #tpu.memory_space<smem>>
    %c56 = arith.constant 56 : index
    %92 = memref.load %arg2[%c56] : memref<64xf32, #tpu.memory_space<smem>>
    %c57 = arith.constant 57 : index
    %93 = memref.load %arg2[%c57] : memref<64xf32, #tpu.memory_space<smem>>
    %c58 = arith.constant 58 : index
    %94 = memref.load %arg2[%c58] : memref<64xf32, #tpu.memory_space<smem>>
    %c59 = arith.constant 59 : index
    %95 = memref.load %arg2[%c59] : memref<64xf32, #tpu.memory_space<smem>>
    %c60 = arith.constant 60 : index
    %96 = memref.load %arg2[%c60] : memref<64xf32, #tpu.memory_space<smem>>
    %c61 = arith.constant 61 : index
    %97 = memref.load %arg2[%c61] : memref<64xf32, #tpu.memory_space<smem>>
    %c62 = arith.constant 62 : index
    %98 = memref.load %arg2[%c62] : memref<64xf32, #tpu.memory_space<smem>>
    %c63 = arith.constant 63 : index
    %99 = memref.load %arg2[%c63] : memref<64xf32, #tpu.memory_space<smem>>
    %cst_8 = arith.constant 0.000000e+00 : f32
    %100 = vector.broadcast %cst_8 : f32 to vector<8x256xf32>
    %cst_9 = arith.constant 0.000000e+00 : f32
    %101 = vector.broadcast %cst_9 : f32 to vector<8x256xf32>
    %c0_i32_10 = arith.constant 0 : i32
    %102 = vector.broadcast %c0_i32_10 : i32 to vector<8x256xi32>
    %103 = arith.cmpi eq, %35, %102 : vector<8x256xi32>
    %104 = vector.broadcast %36 : f32 to vector<8x256xf32>
    %105 = arith.select %103, %104, %100 : vector<8x256xi1>, vector<8x256xf32>
    %106 = vector.broadcast %37 : f32 to vector<8x256xf32>
    %107 = arith.select %103, %106, %101 : vector<8x256xi1>, vector<8x256xf32>
    %c1_i32 = arith.constant 1 : i32
    %108 = vector.broadcast %c1_i32 : i32 to vector<8x256xi32>
    %109 = arith.cmpi eq, %35, %108 : vector<8x256xi32>
    %110 = vector.broadcast %38 : f32 to vector<8x256xf32>
    %111 = arith.select %109, %110, %105 : vector<8x256xi1>, vector<8x256xf32>
    %112 = vector.broadcast %39 : f32 to vector<8x256xf32>
    %113 = arith.select %109, %112, %107 : vector<8x256xi1>, vector<8x256xf32>
    %c2_i32 = arith.constant 2 : i32
    %114 = vector.broadcast %c2_i32 : i32 to vector<8x256xi32>
    %115 = arith.cmpi eq, %35, %114 : vector<8x256xi32>
    %116 = vector.broadcast %40 : f32 to vector<8x256xf32>
    %117 = arith.select %115, %116, %111 : vector<8x256xi1>, vector<8x256xf32>
    %118 = vector.broadcast %41 : f32 to vector<8x256xf32>
    %119 = arith.select %115, %118, %113 : vector<8x256xi1>, vector<8x256xf32>
    %c3_i32 = arith.constant 3 : i32
    %120 = vector.broadcast %c3_i32 : i32 to vector<8x256xi32>
    %121 = arith.cmpi eq, %35, %120 : vector<8x256xi32>
    %122 = vector.broadcast %42 : f32 to vector<8x256xf32>
    %123 = arith.select %121, %122, %117 : vector<8x256xi1>, vector<8x256xf32>
    %124 = vector.broadcast %43 : f32 to vector<8x256xf32>
    %125 = arith.select %121, %124, %119 : vector<8x256xi1>, vector<8x256xf32>
    %c4_i32 = arith.constant 4 : i32
    %126 = vector.broadcast %c4_i32 : i32 to vector<8x256xi32>
    %127 = arith.cmpi eq, %35, %126 : vector<8x256xi32>
    %128 = vector.broadcast %44 : f32 to vector<8x256xf32>
    %129 = arith.select %127, %128, %123 : vector<8x256xi1>, vector<8x256xf32>
    %130 = vector.broadcast %45 : f32 to vector<8x256xf32>
    %131 = arith.select %127, %130, %125 : vector<8x256xi1>, vector<8x256xf32>
    %c5_i32 = arith.constant 5 : i32
    %132 = vector.broadcast %c5_i32 : i32 to vector<8x256xi32>
    %133 = arith.cmpi eq, %35, %132 : vector<8x256xi32>
    %134 = vector.broadcast %46 : f32 to vector<8x256xf32>
    %135 = arith.select %133, %134, %129 : vector<8x256xi1>, vector<8x256xf32>
    %136 = vector.broadcast %47 : f32 to vector<8x256xf32>
    %137 = arith.select %133, %136, %131 : vector<8x256xi1>, vector<8x256xf32>
    %c6_i32 = arith.constant 6 : i32
    %138 = vector.broadcast %c6_i32 : i32 to vector<8x256xi32>
    %139 = arith.cmpi eq, %35, %138 : vector<8x256xi32>
    %140 = vector.broadcast %48 : f32 to vector<8x256xf32>
    %141 = arith.select %139, %140, %135 : vector<8x256xi1>, vector<8x256xf32>
    %142 = vector.broadcast %49 : f32 to vector<8x256xf32>
    %143 = arith.select %139, %142, %137 : vector<8x256xi1>, vector<8x256xf32>
    %c7_i32 = arith.constant 7 : i32
    %144 = vector.broadcast %c7_i32 : i32 to vector<8x256xi32>
    %145 = arith.cmpi eq, %35, %144 : vector<8x256xi32>
    %146 = vector.broadcast %50 : f32 to vector<8x256xf32>
    %147 = arith.select %145, %146, %141 : vector<8x256xi1>, vector<8x256xf32>
    %148 = vector.broadcast %51 : f32 to vector<8x256xf32>
    %149 = arith.select %145, %148, %143 : vector<8x256xi1>, vector<8x256xf32>
    %c8_i32_11 = arith.constant 8 : i32
    %150 = vector.broadcast %c8_i32_11 : i32 to vector<8x256xi32>
    %151 = arith.cmpi eq, %35, %150 : vector<8x256xi32>
    %152 = vector.broadcast %52 : f32 to vector<8x256xf32>
    %153 = arith.select %151, %152, %147 : vector<8x256xi1>, vector<8x256xf32>
    %154 = vector.broadcast %53 : f32 to vector<8x256xf32>
    %155 = arith.select %151, %154, %149 : vector<8x256xi1>, vector<8x256xf32>
    %c9_i32 = arith.constant 9 : i32
    %156 = vector.broadcast %c9_i32 : i32 to vector<8x256xi32>
    %157 = arith.cmpi eq, %35, %156 : vector<8x256xi32>
    %158 = vector.broadcast %54 : f32 to vector<8x256xf32>
    %159 = arith.select %157, %158, %153 : vector<8x256xi1>, vector<8x256xf32>
    %160 = vector.broadcast %55 : f32 to vector<8x256xf32>
    %161 = arith.select %157, %160, %155 : vector<8x256xi1>, vector<8x256xf32>
    %c10_i32 = arith.constant 10 : i32
    %162 = vector.broadcast %c10_i32 : i32 to vector<8x256xi32>
    %163 = arith.cmpi eq, %35, %162 : vector<8x256xi32>
    %164 = vector.broadcast %56 : f32 to vector<8x256xf32>
    %165 = arith.select %163, %164, %159 : vector<8x256xi1>, vector<8x256xf32>
    %166 = vector.broadcast %57 : f32 to vector<8x256xf32>
    %167 = arith.select %163, %166, %161 : vector<8x256xi1>, vector<8x256xf32>
    %c11_i32 = arith.constant 11 : i32
    %168 = vector.broadcast %c11_i32 : i32 to vector<8x256xi32>
    %169 = arith.cmpi eq, %35, %168 : vector<8x256xi32>
    %170 = vector.broadcast %58 : f32 to vector<8x256xf32>
    %171 = arith.select %169, %170, %165 : vector<8x256xi1>, vector<8x256xf32>
    %172 = vector.broadcast %59 : f32 to vector<8x256xf32>
    %173 = arith.select %169, %172, %167 : vector<8x256xi1>, vector<8x256xf32>
    %c12_i32 = arith.constant 12 : i32
    %174 = vector.broadcast %c12_i32 : i32 to vector<8x256xi32>
    %175 = arith.cmpi eq, %35, %174 : vector<8x256xi32>
    %176 = vector.broadcast %60 : f32 to vector<8x256xf32>
    %177 = arith.select %175, %176, %171 : vector<8x256xi1>, vector<8x256xf32>
    %178 = vector.broadcast %61 : f32 to vector<8x256xf32>
    %179 = arith.select %175, %178, %173 : vector<8x256xi1>, vector<8x256xf32>
    %c13_i32 = arith.constant 13 : i32
    %180 = vector.broadcast %c13_i32 : i32 to vector<8x256xi32>
    %181 = arith.cmpi eq, %35, %180 : vector<8x256xi32>
    %182 = vector.broadcast %62 : f32 to vector<8x256xf32>
    %183 = arith.select %181, %182, %177 : vector<8x256xi1>, vector<8x256xf32>
    %184 = vector.broadcast %63 : f32 to vector<8x256xf32>
    %185 = arith.select %181, %184, %179 : vector<8x256xi1>, vector<8x256xf32>
    %c14_i32 = arith.constant 14 : i32
    %186 = vector.broadcast %c14_i32 : i32 to vector<8x256xi32>
    %187 = arith.cmpi eq, %35, %186 : vector<8x256xi32>
    %188 = vector.broadcast %64 : f32 to vector<8x256xf32>
    %189 = arith.select %187, %188, %183 : vector<8x256xi1>, vector<8x256xf32>
    %190 = vector.broadcast %65 : f32 to vector<8x256xf32>
    %191 = arith.select %187, %190, %185 : vector<8x256xi1>, vector<8x256xf32>
    %c15_i32_12 = arith.constant 15 : i32
    %192 = vector.broadcast %c15_i32_12 : i32 to vector<8x256xi32>
    %193 = arith.cmpi eq, %35, %192 : vector<8x256xi32>
    %194 = vector.broadcast %66 : f32 to vector<8x256xf32>
    %195 = arith.select %193, %194, %189 : vector<8x256xi1>, vector<8x256xf32>
    %196 = vector.broadcast %67 : f32 to vector<8x256xf32>
    %197 = arith.select %193, %196, %191 : vector<8x256xi1>, vector<8x256xf32>
    %c16_i32_13 = arith.constant 16 : i32
    %198 = vector.broadcast %c16_i32_13 : i32 to vector<8x256xi32>
    %199 = arith.cmpi eq, %35, %198 : vector<8x256xi32>
    %200 = vector.broadcast %68 : f32 to vector<8x256xf32>
    %201 = arith.select %199, %200, %195 : vector<8x256xi1>, vector<8x256xf32>
    %202 = vector.broadcast %69 : f32 to vector<8x256xf32>
    %203 = arith.select %199, %202, %197 : vector<8x256xi1>, vector<8x256xf32>
    %c17_i32 = arith.constant 17 : i32
    %204 = vector.broadcast %c17_i32 : i32 to vector<8x256xi32>
    %205 = arith.cmpi eq, %35, %204 : vector<8x256xi32>
    %206 = vector.broadcast %70 : f32 to vector<8x256xf32>
    %207 = arith.select %205, %206, %201 : vector<8x256xi1>, vector<8x256xf32>
    %208 = vector.broadcast %71 : f32 to vector<8x256xf32>
    %209 = arith.select %205, %208, %203 : vector<8x256xi1>, vector<8x256xf32>
    %c18_i32 = arith.constant 18 : i32
    %210 = vector.broadcast %c18_i32 : i32 to vector<8x256xi32>
    %211 = arith.cmpi eq, %35, %210 : vector<8x256xi32>
    %212 = vector.broadcast %72 : f32 to vector<8x256xf32>
    %213 = arith.select %211, %212, %207 : vector<8x256xi1>, vector<8x256xf32>
    %214 = vector.broadcast %73 : f32 to vector<8x256xf32>
    %215 = arith.select %211, %214, %209 : vector<8x256xi1>, vector<8x256xf32>
    %c19_i32 = arith.constant 19 : i32
    %216 = vector.broadcast %c19_i32 : i32 to vector<8x256xi32>
    %217 = arith.cmpi eq, %35, %216 : vector<8x256xi32>
    %218 = vector.broadcast %74 : f32 to vector<8x256xf32>
    %219 = arith.select %217, %218, %213 : vector<8x256xi1>, vector<8x256xf32>
    %220 = vector.broadcast %75 : f32 to vector<8x256xf32>
    %221 = arith.select %217, %220, %215 : vector<8x256xi1>, vector<8x256xf32>
    %c20_i32 = arith.constant 20 : i32
    %222 = vector.broadcast %c20_i32 : i32 to vector<8x256xi32>
    %223 = arith.cmpi eq, %35, %222 : vector<8x256xi32>
    %224 = vector.broadcast %76 : f32 to vector<8x256xf32>
    %225 = arith.select %223, %224, %219 : vector<8x256xi1>, vector<8x256xf32>
    %226 = vector.broadcast %77 : f32 to vector<8x256xf32>
    %227 = arith.select %223, %226, %221 : vector<8x256xi1>, vector<8x256xf32>
    %c21_i32 = arith.constant 21 : i32
    %228 = vector.broadcast %c21_i32 : i32 to vector<8x256xi32>
    %229 = arith.cmpi eq, %35, %228 : vector<8x256xi32>
    %230 = vector.broadcast %78 : f32 to vector<8x256xf32>
    %231 = arith.select %229, %230, %225 : vector<8x256xi1>, vector<8x256xf32>
    %232 = vector.broadcast %79 : f32 to vector<8x256xf32>
    %233 = arith.select %229, %232, %227 : vector<8x256xi1>, vector<8x256xf32>
    %c22_i32 = arith.constant 22 : i32
    %234 = vector.broadcast %c22_i32 : i32 to vector<8x256xi32>
    %235 = arith.cmpi eq, %35, %234 : vector<8x256xi32>
    %236 = vector.broadcast %80 : f32 to vector<8x256xf32>
    %237 = arith.select %235, %236, %231 : vector<8x256xi1>, vector<8x256xf32>
    %238 = vector.broadcast %81 : f32 to vector<8x256xf32>
    %239 = arith.select %235, %238, %233 : vector<8x256xi1>, vector<8x256xf32>
    %c23_i32 = arith.constant 23 : i32
    %240 = vector.broadcast %c23_i32 : i32 to vector<8x256xi32>
    %241 = arith.cmpi eq, %35, %240 : vector<8x256xi32>
    %242 = vector.broadcast %82 : f32 to vector<8x256xf32>
    %243 = arith.select %241, %242, %237 : vector<8x256xi1>, vector<8x256xf32>
    %244 = vector.broadcast %83 : f32 to vector<8x256xf32>
    %245 = arith.select %241, %244, %239 : vector<8x256xi1>, vector<8x256xf32>
    %c24_i32 = arith.constant 24 : i32
    %246 = vector.broadcast %c24_i32 : i32 to vector<8x256xi32>
    %247 = arith.cmpi eq, %35, %246 : vector<8x256xi32>
    %248 = vector.broadcast %84 : f32 to vector<8x256xf32>
    %249 = arith.select %247, %248, %243 : vector<8x256xi1>, vector<8x256xf32>
    %250 = vector.broadcast %85 : f32 to vector<8x256xf32>
    %251 = arith.select %247, %250, %245 : vector<8x256xi1>, vector<8x256xf32>
    %c25_i32 = arith.constant 25 : i32
    %252 = vector.broadcast %c25_i32 : i32 to vector<8x256xi32>
    %253 = arith.cmpi eq, %35, %252 : vector<8x256xi32>
    %254 = vector.broadcast %86 : f32 to vector<8x256xf32>
    %255 = arith.select %253, %254, %249 : vector<8x256xi1>, vector<8x256xf32>
    %256 = vector.broadcast %87 : f32 to vector<8x256xf32>
    %257 = arith.select %253, %256, %251 : vector<8x256xi1>, vector<8x256xf32>
    %c26_i32 = arith.constant 26 : i32
    %258 = vector.broadcast %c26_i32 : i32 to vector<8x256xi32>
    %259 = arith.cmpi eq, %35, %258 : vector<8x256xi32>
    %260 = vector.broadcast %88 : f32 to vector<8x256xf32>
    %261 = arith.select %259, %260, %255 : vector<8x256xi1>, vector<8x256xf32>
    %262 = vector.broadcast %89 : f32 to vector<8x256xf32>
    %263 = arith.select %259, %262, %257 : vector<8x256xi1>, vector<8x256xf32>
    %c27_i32 = arith.constant 27 : i32
    %264 = vector.broadcast %c27_i32 : i32 to vector<8x256xi32>
    %265 = arith.cmpi eq, %35, %264 : vector<8x256xi32>
    %266 = vector.broadcast %90 : f32 to vector<8x256xf32>
    %267 = arith.select %265, %266, %261 : vector<8x256xi1>, vector<8x256xf32>
    %268 = vector.broadcast %91 : f32 to vector<8x256xf32>
    %269 = arith.select %265, %268, %263 : vector<8x256xi1>, vector<8x256xf32>
    %c28_i32 = arith.constant 28 : i32
    %270 = vector.broadcast %c28_i32 : i32 to vector<8x256xi32>
    %271 = arith.cmpi eq, %35, %270 : vector<8x256xi32>
    %272 = vector.broadcast %92 : f32 to vector<8x256xf32>
    %273 = arith.select %271, %272, %267 : vector<8x256xi1>, vector<8x256xf32>
    %274 = vector.broadcast %93 : f32 to vector<8x256xf32>
    %275 = arith.select %271, %274, %269 : vector<8x256xi1>, vector<8x256xf32>
    %c29_i32 = arith.constant 29 : i32
    %276 = vector.broadcast %c29_i32 : i32 to vector<8x256xi32>
    %277 = arith.cmpi eq, %35, %276 : vector<8x256xi32>
    %278 = vector.broadcast %94 : f32 to vector<8x256xf32>
    %279 = arith.select %277, %278, %273 : vector<8x256xi1>, vector<8x256xf32>
    %280 = vector.broadcast %95 : f32 to vector<8x256xf32>
    %281 = arith.select %277, %280, %275 : vector<8x256xi1>, vector<8x256xf32>
    %c30_i32 = arith.constant 30 : i32
    %282 = vector.broadcast %c30_i32 : i32 to vector<8x256xi32>
    %283 = arith.cmpi eq, %35, %282 : vector<8x256xi32>
    %284 = vector.broadcast %96 : f32 to vector<8x256xf32>
    %285 = arith.select %283, %284, %279 : vector<8x256xi1>, vector<8x256xf32>
    %286 = vector.broadcast %97 : f32 to vector<8x256xf32>
    %287 = arith.select %283, %286, %281 : vector<8x256xi1>, vector<8x256xf32>
    %c31_i32 = arith.constant 31 : i32
    %288 = vector.broadcast %c31_i32 : i32 to vector<8x256xi32>
    %289 = arith.cmpi eq, %35, %288 : vector<8x256xi32>
    %290 = vector.broadcast %98 : f32 to vector<8x256xf32>
    %291 = arith.select %289, %290, %285 : vector<8x256xi1>, vector<8x256xf32>
    %292 = vector.broadcast %99 : f32 to vector<8x256xf32>
    %293 = arith.select %289, %292, %287 : vector<8x256xi1>, vector<8x256xf32>
    %294 = vector.extract_strided_slice %291 {offsets = [0, 15], sizes = [8, 128], strides = [1, 1]} : vector<8x256xf32> to vector<8x128xf32>
    %c0_14 = arith.constant 0 : index
    %c0_15 = arith.constant 0 : index
    %c0_16 = arith.constant 0 : index
    %295 = vector.load %arg3[%c0_14, %c0_15, %c0_16] : memref<2x16x128xf32, #tpu.memory_space<vmem>>, vector<1x8x128xf32>
    %296 = vector.shape_cast %295 : vector<1x8x128xf32> to vector<8x128xf32>
    %297 = vector.shape_cast %294 : vector<8x128xf32> to vector<1x8x128xf32>
    tpu.vector_store %arg3[%c0_14, %c0_15, %c0_16], %297 {strides = array<i32>} : memref<2x16x128xf32, #tpu.memory_space<vmem>>, vector<1x8x128xf32>,
    %298 = vector.extract_strided_slice %291 {offsets = [0, 7], sizes = [8, 128], strides = [1, 1]} : vector<8x256xf32> to vector<8x128xf32>
    %c0_17 = arith.constant 0 : index
    %c8_18 = arith.constant 8 : index
    %c0_19 = arith.constant 0 : index
    %299 = vector.load %arg3[%c0_17, %c8_18, %c0_19] : memref<2x16x128xf32, #tpu.memory_space<vmem>>, vector<1x8x128xf32>
    %300 = vector.shape_cast %299 : vector<1x8x128xf32> to vector<8x128xf32>
    %301 = vector.shape_cast %298 : vector<8x128xf32> to vector<1x8x128xf32>
    tpu.vector_store %arg3[%c0_17, %c8_18, %c0_19], %301 {strides = array<i32>} : memref<2x16x128xf32, #tpu.memory_space<vmem>>, vector<1x8x128xf32>,
    %302 = vector.extract_strided_slice %293 {offsets = [0, 15], sizes = [8, 128], strides = [1, 1]} : vector<8x256xf32> to vector<8x128xf32>
    %c1_20 = arith.constant 1 : index
    %c0_21 = arith.constant 0 : index
    %c0_22 = arith.constant 0 : index
    %303 = vector.load %arg3[%c1_20, %c0_21, %c0_22] : memref<2x16x128xf32, #tpu.memory_space<vmem>>, vector<1x8x128xf32>
    %304 = vector.shape_cast %303 : vector<1x8x128xf32> to vector<8x128xf32>
    %305 = vector.shape_cast %302 : vector<8x128xf32> to vector<1x8x128xf32>
    tpu.vector_store %arg3[%c1_20, %c0_21, %c0_22], %305 {strides = array<i32>} : memref<2x16x128xf32, #tpu.memory_space<vmem>>, vector<1x8x128xf32>,
    %306 = vector.extract_strided_slice %293 {offsets = [0, 7], sizes = [8, 128], strides = [1, 1]} : vector<8x256xf32> to vector<8x128xf32>
    %c1_23 = arith.constant 1 : index
    %c8_24 = arith.constant 8 : index
    %c0_25 = arith.constant 0 : index
    %307 = vector.load %arg3[%c1_23, %c8_24, %c0_25] : memref<2x16x128xf32, #tpu.memory_space<vmem>>, vector<1x8x128xf32>
    %308 = vector.shape_cast %307 : vector<1x8x128xf32> to vector<8x128xf32>
    %309 = vector.shape_cast %306 : vector<8x128xf32> to vector<1x8x128xf32>
    tpu.vector_store %arg3[%c1_23, %c8_24, %c0_25], %309 {strides = array<i32>} : memref<2x16x128xf32, #tpu.memory_space<vmem>>, vector<1x8x128xf32>,
    return
  }
  func.func @transform_0(%arg0: i32, %arg1: i32) -> i32 {
    %c0_i32 = arith.constant 0 : i32
    %c0_i32_0 = arith.constant 0 : i32
    return %c0_i32 : i32
  }
  func.func @transform_1(%arg0: i32, %arg1: i32) -> (i32, i32, i32) {
    %c0_i32 = arith.constant 0 : i32
    %c0_i32_0 = arith.constant 0 : i32
    return %c0_i32, %arg0, %arg1 : i32, i32, i32
  }
}

</mosaic_0001>

<llo_original>
// kernel: tpu_custom_call.1
$region0: #{tpu_custom_call.1}
  #allocation0 [shape = 'u32[]', space=smem, size = 0x4, offset = 0x4, fixed_abs, tag = 'smem constant byte address 0x4 - core index']
  #allocation1 [shape = 'u32[144,128]{1,0:T(1,128)}', space=vmem, size = 0x12000, scoped, tag = 'internal scratch']
  %s0 = inlined_call_operand.hbm [shape: f32[64], index: 0, kind: input, shape index: {}]
  %s1 = inlined_call_operand.hbm [shape: f32[2,16,128], index: 1, kind: output, shape index: {}]
  %s2 = sld [smem:[#allocation0]]
  $region18: #{tpu_custom_call.1} parent=0
    _
  %s4 = ssub.s32 1, %s2
  %s5 = scalar_select 0, %s4, %s2
  $region1: #{tpu_custom_call.1} parent=0
    #allocation2 [shape = 'u8[512]{0}', space=smem, size = 0x200, scoped, tag = 'input window, operand 0, single buffered']
    #allocation3 [shape = 's32[1]{0}', space=sflag, size = 0x4, scoped, tag = 'scoped memory for tpu_custom_call.1']
    #allocation4 [shape = 's32[1]{0}', space=sflag, size = 0x4, scoped, tag = 'scoped memory for tpu_custom_call.1']
    #allocation5 [shape = 'u8[16384]{0}', space=vmem, size = 0x4000, scoped, tag = 'output window, operand 0, single buffered']
    %6 = vsyncpa [#allocation4], 0
    %7 = vsyncpa [#allocation3], 0
    // Predicated region
    $region2: #{tpu_custom_call.1} parent=1 // pred_check
      _
    $region3: #{tpu_custom_call.1} parent=1 // pred_check_branch
      %9 = sbr.rel (0) target = $region5
    $region4: #{tpu_custom_call.1} parent=1 // pred_region
      %s11 = ssub.s32 16, 16
      %12 = vsyncadd [#allocation4], %s11
      %15 = dma.hbm_to_smem %s0, 16, [#allocation2], [#allocation4]
    $region5: #{tpu_custom_call.1} parent=1 // pred_fallthru
      _
    // Predicated region
    $region6: #{tpu_custom_call.1} parent=1 // pred_check
      _
    $region7: #{tpu_custom_call.1} parent=1 // pred_check_branch
      %17 = sbr.rel (0) target = $region9
    $region8: #{tpu_custom_call.1} parent=1 // pred_region
      %18 = dma.done [#allocation4], 16
    $region9: #{tpu_custom_call.1} parent=1 // pred_fallthru
      _
    %19 = sfence
    %s20 = smul.u32 0, 16
    %s21 = smul.u32 0, 128
    %s22 = ssub.s32 %s21, %s20
    %s23 = ssub.s32 %s22, 15
    %v24 = vlaneseq
    %v25 = vand.u32 %v24, 127
    %v26 = vadd.s32 %v25, 128
    %v27 = vlaneseq
    %v28 = vshrl.u32 %v27, 7
    %v29 = vstv %s23
    %v30 = vadd.s32 %v29, %v25
    %v31 = vadd.s32 %v29, %v26
    %v32 = vsub.s32 %v30, %v28
    %v33 = vsub.s32 %v31, %v28
    %v34 = vsub.s32 0, %v32
    %v35 = vsub.s32 0, %v33
    %vm36 = vcmp.lt.s32.totalorder %v34, 0
    %vm37 = vcmp.lt.s32.totalorder %v35, 0
    %v38 = vsel %vm36, 16, 0
    %v39 = vsel %vm37, 16, 0
    %v40 = vsub.s32 0, %v34
    %v41 = vsel %vm36, %v40, %v34
    %v42 = vsub.s32 0, %v35
    %v43 = vsel %vm37, %v42, %v35
    %vm44 = vcmp.lt.s32.totalorder %v41, 8
    %vm45 = vcmp.lt.s32.totalorder %v43, 8
    %v46 = vcvt.s32.f32 %v41
    %v47 = vcvt.s32.f32 %v43
    %v48 = vmax.f32 %v46, 1.0
    %v49 = vmax.f32 %v47, 1.0
    %v50 = vrcp.pop 8.0
    %v51 = vmul.f32 %v48, %v50
    %v52 = vmul.f32 %v49, %v50
    %v53 = vlog2.pop %v51
    %v54 = vmul.f32 %v53, 0.6931472
    %v55 = vlog2.pop %v52
    %v56 = vmul.f32 %v55, 0.6931472
    %v57 = vrcp.pop 1.3862944
    %v58 = vmul.f32 %v54, %v57
    %v59 = vmul.f32 %v56, %v57
    %v60 = vmul.f32 %v58, 8.0
    %v61 = vmul.f32 %v59, 8.0
    %v62 = vcvt.f32.s32.to.zero.pseudo %v60
    %v63 = vcvt.f32.s32.to.zero.pseudo %v61
    %v64 = vadd.s32 %v62, 8
    %v65 = vadd.s32 %v63, 8
    %vm66 = vcmp.lt.s32.totalorder %v64, 15
    %v67 = vsel %vm66, %v64, 15
    %vm68 = vcmp.lt.s32.totalorder %v65, 15
    %v69 = vsel %vm68, %v65, 15
    %v70 = vsel %vm44, %v41, %v67
    %v71 = vsel %vm45, %v43, %v69
    %v72 = vadd.s32 %v70, %v38
    %v73 = vadd.s32 %v71, %v39
    %s74 = sld [smem:[#allocation2]]
    %s75 = sld [smem:[#allocation2 + $0x1]]
    %s76 = sld [smem:[#allocation2 + $0x2]]
    %s77 = sld [smem:[#allocation2 + $0x3]]
    %s78 = sld [smem:[#allocation2 + $0x4]]
    %s79 = sld [smem:[#allocation2 + $0x5]]
    %s80 = sld [smem:[#allocation2 + $0x6]]
    %s81 = sld [smem:[#allocation2 + $0x7]]
    %s82 = sld [smem:[#allocation2 + $0x8]]
    %s83 = sld [smem:[#allocation2 + $0x9]]
    %s84 = sld [smem:[#allocation2 + $0xa]]
    %s85 = sld [smem:[#allocation2 + $0xb]]
    %s86 = sld [smem:[#allocation2 + $0xc]]
    %s87 = sld [smem:[#allocation2 + $0xd]]
    %s88 = sld [smem:[#allocation2 + $0xe]]
    %s89 = sld [smem:[#allocation2 + $0xf]]
    %s90 = sld [smem:[#allocation2 + $0x10]]
    %s91 = sld [smem:[#allocation2 + $0x11]]
    %s92 = sld [smem:[#allocation2 + $0x12]]
    %s93 = sld [smem:[#allocation2 + $0x13]]
    %s94 = sld [smem:[#allocation2 + $0x14]]
    %s95 = sld [smem:[#allocation2 + $0x15]]
    %s96 = sld [smem:[#allocation2 + $0x16]]
    %s97 = sld [smem:[#allocation2 + $0x17]]
    %s98 = sld [smem:[#allocation2 + $0x18]]
    %s99 = sld [smem:[#allocation2 + $0x19]]
    %s100 = sld [smem:[#allocation2 + $0x1a]]
    %s101 = sld [smem:[#allocation2 + $0x1b]]
    %s102 = sld [smem:[#allocation2 + $0x1c]]
    %s103 = sld [smem:[#allocation2 + $0x1d]]
    %s104 = sld [smem:[#allocation2 + $0x1e]]
    %s105 = sld [smem:[#allocation2 + $0x1f]]
    %s106 = sld [smem:[#allocation2 + $0x20]]
    %s107 = sld [smem:[#allocation2 + $0x21]]
    %s108 = sld [smem:[#allocation2 + $0x22]]
    %s109 = sld [smem:[#allocation2 + $0x23]]
    %s110 = sld [smem:[#allocation2 + $0x24]]
    %s111 = sld [smem:[#allocation2 + $0x25]]
    %s112 = sld [smem:[#allocation2 + $0x26]]
    %s113 = sld [smem:[#allocation2 + $0x27]]
    %s114 = sld [smem:[#allocation2 + $0x28]]
    %s115 = sld [smem:[#allocation2 + $0x29]]
    %s116 = sld [smem:[#allocation2 + $0x2a]]
    %s117 = sld [smem:[#allocation2 + $0x2b]]
    %s118 = sld [smem:[#allocation2 + $0x2c]]
    %s119 = sld [smem:[#allocation2 + $0x2d]]
    %s120 = sld [smem:[#allocation2 + $0x2e]]
    %s121 = sld [smem:[#allocation2 + $0x2f]]
    %s122 = sld [smem:[#allocation2 + $0x30]]
    %s123 = sld [smem:[#allocation2 + $0x31]]
    %s124 = sld [smem:[#allocation2 + $0x32]]
    %s125 = sld [smem:[#allocation2 + $0x33]]
    %s126 = sld [smem:[#allocation2 + $0x34]]
    %s127 = sld [smem:[#allocation2 + $0x35]]
    %s128 = sld [smem:[#allocation2 + $0x36]]
    %s129 = sld [smem:[#allocation2 + $0x37]]
    %s130 = sld [smem:[#allocation2 + $0x38]]
    %s131 = sld [smem:[#allocation2 + $0x39]]
    %s132 = sld [smem:[#allocation2 + $0x3a]]
    %s133 = sld [smem:[#allocation2 + $0x3b]]
    %s134 = sld [smem:[#allocation2 + $0x3c]]
    %s135 = sld [smem:[#allocation2 + $0x3d]]
    %s136 = sld [smem:[#allocation2 + $0x3e]]
    %s137 = sld [smem:[#allocation2 + $0x3f]]
    %vm138 = vcmp.eq.s32.totalorder %v72, 0
    %vm139 = vcmp.eq.s32.totalorder %v73, 0
    %v140 = vstv %s74
    %v141 = vsel %vm138, %v140, 0.0
    %v142 = vsel %vm139, %v140, 0.0
    %v143 = vstv %s75
    %v144 = vsel %vm138, %v143, 0.0
    %v145 = vsel %vm139, %v143, 0.0
    %vm146 = vcmp.eq.s32.totalorder %v72, 1
    %vm147 = vcmp.eq.s32.totalorder %v73, 1
    %v148 = vstv %s76
    %v149 = vsel %vm146, %v148, %v141
    %v150 = vsel %vm147, %v148, %v142
    %v151 = vstv %s77
    %v152 = vsel %vm146, %v151, %v144
    %v153 = vsel %vm147, %v151, %v145
    %vm154 = vcmp.eq.s32.totalorder %v72, 2
    %vm155 = vcmp.eq.s32.totalorder %v73, 2
    %v156 = vstv %s78
    %v157 = vsel %vm154, %v156, %v149
    %v158 = vsel %vm155, %v156, %v150
    %v159 = vstv %s79
    %v160 = vsel %vm154, %v159, %v152
    %v161 = vsel %vm155, %v159, %v153
    %vm162 = vcmp.eq.s32.totalorder %v72, 3
    %vm163 = vcmp.eq.s32.totalorder %v73, 3
    %v164 = vstv %s80
    %v165 = vsel %vm162, %v164, %v157
    %v166 = vsel %vm163, %v164, %v158
    %v167 = vstv %s81
    %v168 = vsel %vm162, %v167, %v160
    %v169 = vsel %vm163, %v167, %v161
    %vm170 = vcmp.eq.s32.totalorder %v72, 4
    %vm171 = vcmp.eq.s32.totalorder %v73, 4
    %v172 = vstv %s82
    %v173 = vsel %vm170, %v172, %v165
    %v174 = vsel %vm171, %v172, %v166
    %v175 = vstv %s83
    %v176 = vsel %vm170, %v175, %v168
    %v177 = vsel %vm171, %v175, %v169
    %vm178 = vcmp.eq.s32.totalorder %v72, 5
    %vm179 = vcmp.eq.s32.totalorder %v73, 5
    %v180 = vstv %s84
    %v181 = vsel %vm178, %v180, %v173
    %v182 = vsel %vm179, %v180, %v174
    %v183 = vstv %s85
    %v184 = vsel %vm178, %v183, %v176
    %v185 = vsel %vm179, %v183, %v177
    %vm186 = vcmp.eq.s32.totalorder %v72, 6
    %vm187 = vcmp.eq.s32.totalorder %v73, 6
    %v188 = vstv %s86
    %v189 = vsel %vm186, %v188, %v181
    %v190 = vsel %vm187, %v188, %v182
    %v191 = vstv %s87
    %v192 = vsel %vm186, %v191, %v184
    %v193 = vsel %vm187, %v191, %v185
    %vm194 = vcmp.eq.s32.totalorder %v72, 7
    %vm195 = vcmp.eq.s32.totalorder %v73, 7
    %v196 = vstv %s88
    %v197 = vsel %vm194, %v196, %v189
    %v198 = vsel %vm195, %v196, %v190
    %v199 = vstv %s89
    %v200 = vsel %vm194, %v199, %v192
    %v201 = vsel %vm195, %v199, %v193
    %vm202 = vcmp.eq.s32.totalorder %v72, 8
    %vm203 = vcmp.eq.s32.totalorder %v73, 8
    %v204 = vstv %s90
    %v205 = vsel %vm202, %v204, %v197
    %v206 = vsel %vm203, %v204, %v198
    %v207 = vstv %s91
    %v208 = vsel %vm202, %v207, %v200
    %v209 = vsel %vm203, %v207, %v201
    %vm210 = vcmp.eq.s32.totalorder %v72, 9
    %vm211 = vcmp.eq.s32.totalorder %v73, 9
    %v212 = vstv %s92
    %v213 = vsel %vm210, %v212, %v205
    %v214 = vsel %vm211, %v212, %v206
    %v215 = vstv %s93
    %v216 = vsel %vm210, %v215, %v208
    %v217 = vsel %vm211, %v215, %v209
    %vm218 = vcmp.eq.s32.totalorder %v72, 10
    %vm219 = vcmp.eq.s32.totalorder %v73, 10
    %v220 = vstv %s94
    %v221 = vsel %vm218, %v220, %v213
    %v222 = vsel %vm219, %v220, %v214
    %v223 = vstv %s95
    %v224 = vsel %vm218, %v223, %v216
    %v225 = vsel %vm219, %v223, %v217
    %vm226 = vcmp.eq.s32.totalorder %v72, 11
    %vm227 = vcmp.eq.s32.totalorder %v73, 11
    %v228 = vstv %s96
    %v229 = vsel %vm226, %v228, %v221
    %v230 = vsel %vm227, %v228, %v222
    %v231 = vstv %s97
    %v232 = vsel %vm226, %v231, %v224
    %v233 = vsel %vm227, %v231, %v225
    %vm234 = vcmp.eq.s32.totalorder %v72, 12
    %vm235 = vcmp.eq.s32.totalorder %v73, 12
    %v236 = vstv %s98
    %v237 = vsel %vm234, %v236, %v229
    %v238 = vsel %vm235, %v236, %v230
    %v239 = vstv %s99
    %v240 = vsel %vm234, %v239, %v232
    %v241 = vsel %vm235, %v239, %v233
    %vm242 = vcmp.eq.s32.totalorder %v72, 13
    %vm243 = vcmp.eq.s32.totalorder %v73, 13
    %v244 = vstv %s100
    %v245 = vsel %vm242, %v244, %v237
    %v246 = vsel %vm243, %v244, %v238
    %v247 = vstv %s101
    %v248 = vsel %vm242, %v247, %v240
    %v249 = vsel %vm243, %v247, %v241
    %vm250 = vcmp.eq.s32.totalorder %v72, 14
    %vm251 = vcmp.eq.s32.totalorder %v73, 14
    %v252 = vstv %s102
    %v253 = vsel %vm250, %v252, %v245
    %v254 = vsel %vm251, %v252, %v246
    %v255 = vstv %s103
    %v256 = vsel %vm250, %v255, %v248
    %v257 = vsel %vm251, %v255, %v249
    %vm258 = vcmp.eq.s32.totalorder %v72, 15
    %vm259 = vcmp.eq.s32.totalorder %v73, 15
    %v260 = vstv %s104
    %v261 = vsel %vm258, %v260, %v253
    %v262 = vsel %vm259, %v260, %v254
    %v263 = vstv %s105
    %v264 = vsel %vm258, %v263, %v256
    %v265 = vsel %vm259, %v263, %v257
    %vm266 = vcmp.eq.s32.totalorder %v72, 16
    %vm267 = vcmp.eq.s32.totalorder %v73, 16
    %v268 = vstv %s106
    %v269 = vsel %vm266, %v268, %v261
    %v270 = vsel %vm267, %v268, %v262
    %v271 = vstv %s107
    %v272 = vsel %vm266, %v271, %v264
    %v273 = vsel %vm267, %v271, %v265
    %vm274 = vcmp.eq.s32.totalorder %v72, 17
    %vm275 = vcmp.eq.s32.totalorder %v73, 17
    %v276 = vstv %s108
    %v277 = vsel %vm274, %v276, %v269
    %v278 = vsel %vm275, %v276, %v270
    %v279 = vstv %s109
    %v280 = vsel %vm274, %v279, %v272
    %v281 = vsel %vm275, %v279, %v273
    %vm282 = vcmp.eq.s32.totalorder %v72, 18
    %vm283 = vcmp.eq.s32.totalorder %v73, 18
    %v284 = vstv %s110
    %v285 = vsel %vm282, %v284, %v277
    %v286 = vsel %vm283, %v284, %v278
    %v287 = vstv %s111
    %v288 = vsel %vm282, %v287, %v280
    %v289 = vsel %vm283, %v287, %v281
    %vm290 = vcmp.eq.s32.totalorder %v72, 19
    %vm291 = vcmp.eq.s32.totalorder %v73, 19
    %v292 = vstv %s112
    %v293 = vsel %vm290, %v292, %v285
    %v294 = vsel %vm291, %v292, %v286
    %v295 = vstv %s113
    %v296 = vsel %vm290, %v295, %v288
    %v297 = vsel %vm291, %v295, %v289
    %vm298 = vcmp.eq.s32.totalorder %v72, 20
    %vm299 = vcmp.eq.s32.totalorder %v73, 20
    %v300 = vstv %s114
    %v301 = vsel %vm298, %v300, %v293
    %v302 = vsel %vm299, %v300, %v294
    %v303 = vstv %s115
    %v304 = vsel %vm298, %v303, %v296
    %v305 = vsel %vm299, %v303, %v297
    %vm306 = vcmp.eq.s32.totalorder %v72, 21
    %vm307 = vcmp.eq.s32.totalorder %v73, 21
    %v308 = vstv %s116
    %v309 = vsel %vm306, %v308, %v301
    %v310 = vsel %vm307, %v308, %v302
    %v311 = vstv %s117
    %v312 = vsel %vm306, %v311, %v304
    %v313 = vsel %vm307, %v311, %v305
    %vm314 = vcmp.eq.s32.totalorder %v72, 22
    %vm315 = vcmp.eq.s32.totalorder %v73, 22
    %v316 = vstv %s118
    %v317 = vsel %vm314, %v316, %v309
    %v318 = vsel %vm315, %v316, %v310
    %v319 = vstv %s119
    %v320 = vsel %vm314, %v319, %v312
    %v321 = vsel %vm315, %v319, %v313
    %vm322 = vcmp.eq.s32.totalorder %v72, 23
    %vm323 = vcmp.eq.s32.totalorder %v73, 23
    %v324 = vstv %s120
    %v325 = vsel %vm322, %v324, %v317
    %v326 = vsel %vm323, %v324, %v318
    %v327 = vstv %s121
    %v328 = vsel %vm322, %v327, %v320
    %v329 = vsel %vm323, %v327, %v321
    %vm330 = vcmp.eq.s32.totalorder %v72, 24
    %vm331 = vcmp.eq.s32.totalorder %v73, 24
    %v332 = vstv %s122
    %v333 = vsel %vm330, %v332, %v325
    %v334 = vsel %vm331, %v332, %v326
    %v335 = vstv %s123
    %v336 = vsel %vm330, %v335, %v328
    %v337 = vsel %vm331, %v335, %v329
    %vm338 = vcmp.eq.s32.totalorder %v72, 25
    %vm339 = vcmp.eq.s32.totalorder %v73, 25
    %v340 = vstv %s124
    %v341 = vsel %vm338, %v340, %v333
    %v342 = vsel %vm339, %v340, %v334
    %v343 = vstv %s125
    %v344 = vsel %vm338, %v343, %v336
    %v345 = vsel %vm339, %v343, %v337
    %vm346 = vcmp.eq.s32.totalorder %v72, 26
    %vm347 = vcmp.eq.s32.totalorder %v73, 26
    %v348 = vstv %s126
    %v349 = vsel %vm346, %v348, %v341
    %v350 = vsel %vm347, %v348, %v342
    %v351 = vstv %s127
    %v352 = vsel %vm346, %v351, %v344
    %v353 = vsel %vm347, %v351, %v345
    %vm354 = vcmp.eq.s32.totalorder %v72, 27
    %vm355 = vcmp.eq.s32.totalorder %v73, 27
    %v356 = vstv %s128
    %v357 = vsel %vm354, %v356, %v349
    %v358 = vsel %vm355, %v356, %v350
    %v359 = vstv %s129
    %v360 = vsel %vm354, %v359, %v352
    %v361 = vsel %vm355, %v359, %v353
    %vm362 = vcmp.eq.s32.totalorder %v72, 28
    %vm363 = vcmp.eq.s32.totalorder %v73, 28
    %v364 = vstv %s130
    %v365 = vsel %vm362, %v364, %v357
    %v366 = vsel %vm363, %v364, %v358
    %v367 = vstv %s131
    %v368 = vsel %vm362, %v367, %v360
    %v369 = vsel %vm363, %v367, %v361
    %vm370 = vcmp.eq.s32.totalorder %v72, 29
    %vm371 = vcmp.eq.s32.totalorder %v73, 29
    %v372 = vstv %s132
    %v373 = vsel %vm370, %v372, %v365
    %v374 = vsel %vm371, %v372, %v366
    %v375 = vstv %s133
    %v376 = vsel %vm370, %v375, %v368
    %v377 = vsel %vm371, %v375, %v369
    %vm378 = vcmp.eq.s32.totalorder %v72, 30
    %vm379 = vcmp.eq.s32.totalorder %v73, 30
    %v380 = vstv %s134
    %v381 = vsel %vm378, %v380, %v373
    %v382 = vsel %vm379, %v380, %v374
    %v383 = vstv %s135
    %v384 = vsel %vm378, %v383, %v376
    %v385 = vsel %vm379, %v383, %v377
    %vm386 = vcmp.eq.s32.totalorder %v72, 31
    %vm387 = vcmp.eq.s32.totalorder %v73, 31
    %v388 = vstv %s136
    %v389 = vsel %vm386, %v388, %v381
    %v390 = vsel %vm387, %v388, %v382
    %v391 = vstv %s137
    %v392 = vsel %vm386, %v391, %v384
    %v393 = vsel %vm387, %v391, %v385
    %396 = vrot.lane.b32.xlu0 %v389, 113
    %v397 = vpop.permute.xlu0 %396
    %398 = vrot.lane.b32.xlu0 %v390, 113
    %v399 = vpop.permute.xlu0 %398
    %vm400 = vcmask 924672
    %v401 = vsel %vm400, %v397, %v399
    %403 = vst [vmem:[#allocation5] sm:$0xff] %v401
    %404 = vrot.lane.b32.xlu0 %v389, 121
    %v405 = vpop.permute.xlu0 %404
    %406 = vrot.lane.b32.xlu0 %v390, 121
    %v407 = vpop.permute.xlu0 %406
    %vm408 = vcmask 990208
    %v409 = vsel %vm408, %v405, %v407
    %411 = vst [vmem:[#allocation5 + $0x8] sm:$0xff] %v409
    %414 = vrot.lane.b32.xlu0 %v392, 113
    %v415 = vpop.permute.xlu0 %414
    %416 = vrot.lane.b32.xlu0 %v393, 113
    %v417 = vpop.permute.xlu0 %416
    %v418 = vsel %vm400, %v415, %v417
    %s420 = scalar_lea.vmem [#allocation5], 16
    %421 = vst [vmem:[%s420] sm:$0xff] %v418
    %422 = vrot.lane.b32.xlu0 %v392, 121
    %v423 = vpop.permute.xlu0 %422
    %424 = vrot.lane.b32.xlu0 %v393, 121
    %v425 = vpop.permute.xlu0 %424
    %v426 = vsel %vm408, %v423, %v425
    %428 = vst [vmem:[%s420 + $0x8] sm:$0xff] %v426
    // Predicated region
    $region10: #{tpu_custom_call.1} parent=1 // pred_check
      _
    $region11: #{tpu_custom_call.1} parent=1 // pred_check_branch
      %430 = sbr.rel (0) target = $region13
    $region12: #{tpu_custom_call.1} parent=1 // pred_region
      %s432 = ssub.s32 512, 512
      %433 = vsyncadd [#allocation3], %s432
      %s434 = sshll.u32 [#allocation5], 4
      %s435 = int_to_ptr.vmem [resolvable:$true] %s434
      %440 = dma.vmem_to_hbm [thread:$0]  %s435, 512, %s1, [#allocation3], 128, 128, 8
    $region13: #{tpu_custom_call.1} parent=1 // pred_fallthru
      _
    // Predicated region
    $region14: #{tpu_custom_call.1} parent=1 // pred_check
      _
    $region15: #{tpu_custom_call.1} parent=1 // pred_check_branch
      %442 = sbr.rel (0) target = $region17
    $region16: #{tpu_custom_call.1} parent=1 // pred_region
      %443 = dma.done [#allocation3], 512
    $region17: #{tpu_custom_call.1} parent=1 // pred_fallthru
      _
    %444 = vsyncpa [#allocation3], 1
    %445 = vsyncpa [#allocation4], 1

</llo_original>
